<compile_context>
chip_gen: v7x
topology: tpu7x:2x2x1
jax: 0.10.0
libtpu: 0.0.40
codegen_flags: <defaults>
</compile_context>

<pallas_src>
import jax
import jax.numpy as jnp
from jax.experimental import pallas as pl
from jax.experimental.pallas import tpu as pltpu

# Fixed conv weights from the module __init__ (documentation of the spec; the
# kernel/reference realize these sparse taps as neighbour differences).
KERNEL_V = jnp.array([[0.0, -1.0, 0.0],
                      [0.0,  0.0, 0.0],
                      [0.0,  1.0, 0.0]], dtype=jnp.float32).reshape(1, 1, 3, 3)
KERNEL_H = jnp.array([[0.0,  0.0, 0.0],
                      [-1.0, 0.0, 1.0],
                      [0.0,  0.0, 0.0]], dtype=jnp.float32).reshape(1, 1, 3, 3)


def _round_up(n, m):
    return -(-n // m) * m


def _sublane_pack(dtype):
    # Native sublane packing: 8 rows for 32-bit, 16 for 16-bit, 32 for 8-bit.
    return {4: 8, 2: 16, 1: 32}.get(jnp.dtype(dtype).itemsize, 8)


def _edge(v, h, approx):
    """sigmoid(sqrt(v^2 + h^2 + 1e-6)); exp and reciprocal run on the EUP."""
    mag = jnp.sqrt(v * v + h * h + 1e-6)
    return pl.reciprocal(1.0 + jnp.exp(-mag), approx=approx)


def _make_kernel(H, th, hsub, approx):
    def kernel(x_ref, top_ref, bot_ref, o_ref):
        # x_ref:   (1, 1, TH, W) channel-0 row tile (cast to f32 here).
        # top_ref: (1, 1, hsub, W) slab whose LAST row is the row above the tile.
        # bot_ref: (1, 1, hsub, W) slab whose FIRST row is the row below the tile.
        t = pl.program_id(1)
        nt = pl.num_programs(1)
        TH, W = x_ref.shape[2], x_ref.shape[3]
        odt = o_ref.dtype

        x = x_ref[0, 0].astype(jnp.float32)                         # (TH, W)

        # Vertical gradient with wrap-around sublane rolls (XLU slot); the wrap
        # is only wrong at rows 0 and TH-1, which are fixed up below -> no
        # full-tile row iota / compares / selects on the VPU.
        v = pltpu.roll(x, TH - 1, 0) - pltpu.roll(x, 1, 0)          # x[i+1]-x[i-1]

        # Horizontal gradient, zero padded at the left / right image borders.
        col = jax.lax.broadcasted_iota(jnp.int32, (TH, W), 1)
        x_r = jnp.where(col == W - 1, 0.0, pltpu.roll(x, W - 1, 1))  # x[:, j+1]
        x_l = jnp.where(col == 0, 0.0, pltpu.roll(x, 1, 1))          # x[:, j-1]
        h = x_r - x_l

        o_ref[0, 0] = _edge(v, h, approx).astype(odt)

        # Halo rows above / below this tile (zero at the top / bottom borders).
        # jnp.where (not multiply-by-zero) so clamped garbage Inf/NaN never leaks.
        ht = top_ref[0, 0, hsub - 1:hsub, :].astype(jnp.float32)     # (1, W)
        ht = jnp.where(t > 0, ht, 0.0)
        hb = bot_ref[0, 0, 0:1, :].astype(jnp.float32)               # (1, W)
        hb = jnp.where(t < nt - 1, hb, 0.0)

        # Fix row 0 of the tile: needs the row above (top halo).
        o_ref[0, 0, 0:1, :] = _edge(x[1:2, :] - ht, h[0:1, :], approx).astype(odt)

        # Fix row TH-1 of the tile: needs the row below (bottom halo).  For a
        # partial tail tile this row is past the image and the store is masked.
        o_ref[0, 0, TH - 1:TH, :] = _edge(
            hb - x[TH - 2:TH - 1, :], h[TH - 1:TH, :], approx).astype(odt)

        # If the grid has a partial tail tile, also fix the image's true bottom
        # row inside it (the row below it is outside the image => zero).  All
        # indices here are Python ints (static slices only).
        if H % th != 0:
            nt_py = pl.cdiv(H, th)
            lp = H - (nt_py - 1) * th - 1     # local index of global row H-1

            @pl.when(t == nt - 1)
            def _():
                above = x[lp - 1:lp, :] if lp >= 1 else ht
                o_ref[0, 0, lp:lp + 1, :] = _edge(
                    0.0 - above, h[lp:lp + 1, :], approx).astype(odt)

    return kernel


def _choose_row_tile(H, W, hsub, B):
    # ~1 MiB f32 tiles already hit ~85% of the HBM roofline; keeping them small
    # bounds double-buffered in/out blocks + ~10 live f32 temporaries well under
    # v5e's 16 MiB scoped-VMEM default and v7x's 64 MiB physical VMEM.
    target_bytes = 1 << 20
    th = max(hsub, (target_bytes // max(4 * W, 1)) // hsub * hsub)
    th = min(th, max(hsub, (H // hsub) * hsub))          # block height <= H
    if B == 1 and H > hsub:
        # Guarantee >= 2 row tiles so the DMA pipeline (and v7x's second
        # TensorCore) have work even for single-image inputs.
        th = min(th, max(hsub, _round_up(pl.cdiv(H, 2), hsub)))
    return th


def find_coarse_edge(x, *, row_tile=None, out_dtype=jnp.float32,
                     approx_sigmoid=True):
    """x: (B, C, H, W) any float dtype -> (B, 1, H, W) `out_dtype` edge map."""
    B, C, H, W = x.shape
    if H < 2:
        raise ValueError("find_coarse_edge requires H >= 2")

    hsub = _sublane_pack(x.dtype)
    if H < hsub:
        # Tiny height: one full-extent block; halos are never used (zeroed).
        hsub = H
        th = H
    else:
        th = row_tile if row_tile is not None else _choose_row_tile(H, W, hsub, B)
        th = max(hsub, (th // hsub) * hsub)              # multiple of packing
        th = min(th, max(hsub, (H // hsub) * hsub))      # block height <= H

    nt = pl.cdiv(H, th)
    r = th // hsub
    hmax_blk = pl.cdiv(H, hsub) - 1

    # Generation-aware scoped-VMEM limit (v5e default 16 MiB is tight; v7x has
    # only 64 MiB physical).  Leave headroom for the compiler.
    try:
        vmem_phys = pltpu.get_tpu_info().vmem_capacity_bytes
    except Exception:
        vmem_phys = 64 * 1024 * 1024
    vmem_limit = min(32 * 1024 * 1024, (3 * vmem_phys) // 4)

    kernel = _make_kernel(H, th, hsub, approx_sigmoid)

    return pl.pallas_call(
        kernel,
        out_shape=jax.ShapeDtypeStruct((B, 1, H, W), out_dtype),
        grid=(B, nt),
        in_specs=[
            # channel-0 row tile of the raw NCHW tensor (cast fused in-kernel).
            pl.BlockSpec((1, 1, th, W), lambda b, t: (b, 0, t, 0)),
            # halo slab whose LAST row is the row just above this tile.
            pl.BlockSpec((1, 1, hsub, W),
                         lambda b, t: (b, 0, jnp.maximum(t * r - 1, 0), 0)),
            # halo slab whose FIRST row is the row just below this tile.
            pl.BlockSpec((1, 1, hsub, W),
                         lambda b, t: (b, 0, jnp.minimum((t + 1) * r, hmax_blk), 0)),
        ],
        out_specs=pl.BlockSpec((1, 1, th, W), lambda b, t: (b, 0, t, 0)),
        compiler_params=pltpu.CompilerParams(
            dimension_semantics=("parallel", "parallel"),
            vmem_limit_bytes=vmem_limit,
        ),
    )(x, x, x)


def reference(x):
    """Pure-JAX reference (exact f32 shift/diff form of the 3x3 taps)."""
    x0 = x[:, 0].astype(jnp.float32)                     # (B, H, W)
    p = jnp.pad(x0, ((0, 0), (1, 1), (1, 1)))
    v = p[:, 2:, 1:-1] - p[:, :-2, 1:-1]                 # x[i+1, j] - x[i-1, j]
    h = p[:, 1:-1, 2:] - p[:, 1:-1, :-2]                 # x[i, j+1] - x[i, j-1]
    return jax.nn.sigmoid(jnp.sqrt(v * v + h * h + 1e-6))[:, None]


if __name__ == "__main__":
    key = jax.random.PRNGKey(0)
    k1, k2, k3 = jax.random.split(key, 3)

    # (B=2, C=4) f32, lane-dense W: single tile per batch element (border path).
    x1 = jax.random.normal(k1, (2, 4, 16, 128), dtype=jnp.float32)
    ref1 = reference(x1)
    out1 = jax.block_until_ready(find_coarse_edge(x1, approx_sigmoid=False))
    assert out1.shape == (2, 1, 16, 128), out1.shape
    assert jnp.allclose(out1, ref1, rtol=1e-5, atol=1e-5), "exact-sigmoid mismatch"
    out1a = jax.block_until_ready(find_coarse_edge(x1))   # approx EUP reciprocal
    assert jnp.allclose(out1a, ref1, rtol=5e-3, atol=5e-3), "approx-sigmoid mismatch"

    # H=17 (not a multiple of 8): cdiv grid, halo path, partial tail tile whose
    # only valid row is the image bottom row (exercises the lp == 0 fixup).
    x2 = jax.random.normal(k2, (2, 3, 17, 128), dtype=jnp.float32)
    out2 = jax.block_until_ready(find_coarse_edge(x2, row_tile=8,
                                                  approx_sigmoid=False))
    assert out2.shape == (2, 1, 17, 128), out2.shape
    assert jnp.allclose(out2, reference(x2), rtol=1e-5, atol=1e-5), "tiled mismatch"

    # bf16 input, B=1 (forced >= 2 row tiles), 16-row packing-aligned halos,
    # partial tail tile, fused bf16 -> f32 cast.
    x3 = jax.random.normal(k3, (1, 2, 20, 256), dtype=jnp.bfloat16)
    out3 = jax.block_until_ready(find_coarse_edge(x3))
    assert out3.shape == (1, 1, 20, 256), out3.shape
    assert jnp.allclose(out3, reference(x3), rtol=5e-3, atol=5e-3), "bf16 mismatch"

    print("KERNEL_OK")
</pallas_src>

<mosaic_0001>
module attributes {stable_mosaic.version = 11 : i64} {
  func.func @kernel(%arg0: i32, %arg1: i32, %arg2: memref<1x1x16x128xf32, #tpu.memory_space<vmem>>, %arg3: memref<1x1x8x128xf32, #tpu.memory_space<vmem>>, %arg4: memref<1x1x8x128xf32, #tpu.memory_space<vmem>>, %arg5: memref<1x1x16x128xf32, #tpu.memory_space<vmem>>) attributes {dimension_semantics = [#tpu.dimension_semantics<parallel>, #tpu.dimension_semantics<parallel>], iteration_bounds = array<i64: 2, 1>, scalar_prefetch = 0 : i64, scratch_operands = 0 : i64, tpu.core_type = #tpu.core_type<tc>, window_params = [{transform_indices = @transform_0, window_bounds = array<i64: 1, 1, 16, 128>}, {transform_indices = @transform_1, window_bounds = array<i64: 1, 1, 8, 128>}, {transform_indices = @transform_2, window_bounds = array<i64: 1, 1, 8, 128>}, {transform_indices = @transform_3, window_bounds = array<i64: 1, 1, 16, 128>}]} {
    %c0 = arith.constant 0 : index
    %c0_0 = arith.constant 0 : index
    %c0_1 = arith.constant 0 : index
    %c0_2 = arith.constant 0 : index
    %0 = vector.load %arg2[%c0, %c0_0, %c0_1, %c0_2] : memref<1x1x16x128xf32, #tpu.memory_space<vmem>>, vector<1x1x16x128xf32>
    %1 = vector.shape_cast %0 : vector<1x1x16x128xf32> to vector<16x128xf32>
    %c15_i32 = arith.constant 15 : i32
    %2 = tpu.dynamic_rotate %1 by %c15_i32 dim 0 : vector<16x128xf32>, i32 -> vector<16x128xf32>
    %c1_i32 = arith.constant 1 : i32
    %3 = tpu.dynamic_rotate %1 by %c1_i32 dim 0 : vector<16x128xf32>, i32 -> vector<16x128xf32>
    %4 = arith.subf %2, %3 : vector<16x128xf32>
    %5 = tpu.iota {dimensions = array<i32: 1>} : vector<16x128xi32>
    %c127_i32 = arith.constant 127 : i32
    %6 = vector.broadcast %c127_i32 : i32 to vector<16x128xi32>
    %7 = arith.cmpi eq, %5, %6 : vector<16x128xi32>
    %c127_i32_3 = arith.constant 127 : i32
    %8 = tpu.dynamic_rotate %1 by %c127_i32_3 dim 1 : vector<16x128xf32>, i32 -> vector<16x128xf32>
    %cst = arith.constant 0.000000e+00 : f32
    %9 = vector.broadcast %cst : f32 to vector<16x128xf32>
    %10 = arith.select %7, %9, %8 : vector<16x128xi1>, vector<16x128xf32>
    %c0_i32 = arith.constant 0 : i32
    %11 = vector.broadcast %c0_i32 : i32 to vector<16x128xi32>
    %12 = arith.cmpi eq, %5, %11 : vector<16x128xi32>
    %c1_i32_4 = arith.constant 1 : i32
    %13 = tpu.dynamic_rotate %1 by %c1_i32_4 dim 1 : vector<16x128xf32>, i32 -> vector<16x128xf32>
    %cst_5 = arith.constant 0.000000e+00 : f32
    %14 = vector.broadcast %cst_5 : f32 to vector<16x128xf32>
    %15 = arith.select %12, %14, %13 : vector<16x128xi1>, vector<16x128xf32>
    %16 = arith.subf %10, %15 : vector<16x128xf32>
    %17 = arith.mulf %4, %4 : vector<16x128xf32>
    %18 = arith.mulf %16, %16 : vector<16x128xf32>
    %19 = arith.addf %17, %18 : vector<16x128xf32>
    %cst_6 = arith.constant 9.99999997E-7 : f32
    %20 = vector.broadcast %cst_6 : f32 to vector<16x128xf32>
    %21 = arith.addf %19, %20 : vector<16x128xf32>
    %22 = math.sqrt %21 : vector<16x128xf32>
    %cst_7 = arith.constant 0.000000e+00 : f32
    %23 = vector.broadcast %cst_7 : f32 to vector<16x128xf32>
    %24 = arith.subf %23, %22 : vector<16x128xf32>
    %25 = math.exp %24 : vector<16x128xf32>
    %cst_8 = arith.constant 1.000000e+00 : f32
    %26 = vector.broadcast %cst_8 : f32 to vector<16x128xf32>
    %27 = arith.addf %26, %25 : vector<16x128xf32>
    %28 = tpu.reciprocal %27 : vector<16x128xf32> -> vector<16x128xf32>
    %c0_9 = arith.constant 0 : index
    %c0_10 = arith.constant 0 : index
    %c0_11 = arith.constant 0 : index
    %c0_12 = arith.constant 0 : index
    %29 = vector.load %arg5[%c0_9, %c0_10, %c0_11, %c0_12] : memref<1x1x16x128xf32, #tpu.memory_space<vmem>>, vector<1x1x16x128xf32>
    %30 = vector.shape_cast %29 : vector<1x1x16x128xf32> to vector<16x128xf32>
    %31 = vector.shape_cast %28 : vector<16x128xf32> to vector<1x1x16x128xf32>
    tpu.vector_store %arg5[%c0_9, %c0_10, %c0_11, %c0_12], %31 {strides = array<i32>} : memref<1x1x16x128xf32, #tpu.memory_space<vmem>>, vector<1x1x16x128xf32>,
    %c0_13 = arith.constant 0 : index
    %c0_14 = arith.constant 0 : index
    %c7 = arith.constant 7 : index
    %c0_15 = arith.constant 0 : index
    %32 = vector.load %arg3[%c0_13, %c0_14, %c7, %c0_15] : memref<1x1x8x128xf32, #tpu.memory_space<vmem>>, vector<1x1x1x128xf32>
    %33 = vector.shape_cast %32 : vector<1x1x1x128xf32> to vector<1x128xf32>
    %c0_i32_16 = arith.constant 0 : i32
    %34 = arith.cmpi sgt, %arg1, %c0_i32_16 : i32
    %cst_17 = arith.constant 0.000000e+00 : f32
    %35 = vector.broadcast %cst_17 : f32 to vector<1x128xf32>
    %36 = arith.select %34, %33, %35 : vector<1x128xf32>
    %c0_18 = arith.constant 0 : index
    %c0_19 = arith.constant 0 : index
    %c0_20 = arith.constant 0 : index
    %c0_21 = arith.constant 0 : index
    %37 = vector.load %arg4[%c0_18, %c0_19, %c0_20, %c0_21] : memref<1x1x8x128xf32, #tpu.memory_space<vmem>>, vector<1x1x1x128xf32>
    %38 = vector.shape_cast %37 : vector<1x1x1x128xf32> to vector<1x128xf32>
    %c0_i32_22 = arith.constant 0 : i32
    %39 = arith.cmpi slt, %arg1, %c0_i32_22 : i32
    %cst_23 = arith.constant 0.000000e+00 : f32
    %40 = vector.broadcast %cst_23 : f32 to vector<1x128xf32>
    %41 = arith.select %39, %38, %40 : vector<1x128xf32>
    %42 = vector.extract_strided_slice %1 {offsets = [1, 0], sizes = [1, 128], strides = [1, 1]} : vector<16x128xf32> to vector<1x128xf32>
    %43 = arith.subf %42, %36 : vector<1x128xf32>
    %44 = vector.extract_strided_slice %16 {offsets = [0, 0], sizes = [1, 128], strides = [1, 1]} : vector<16x128xf32> to vector<1x128xf32>
    %45 = arith.mulf %43, %43 : vector<1x128xf32>
    %46 = arith.mulf %44, %44 : vector<1x128xf32>
    %47 = arith.addf %45, %46 : vector<1x128xf32>
    %cst_24 = arith.constant 9.99999997E-7 : f32
    %48 = vector.broadcast %cst_24 : f32 to vector<1x128xf32>
    %49 = arith.addf %47, %48 : vector<1x128xf32>
    %50 = math.sqrt %49 : vector<1x128xf32>
    %cst_25 = arith.constant 0.000000e+00 : f32
    %51 = vector.broadcast %cst_25 : f32 to vector<1x128xf32>
    %52 = arith.subf %51, %50 : vector<1x128xf32>
    %53 = math.exp %52 : vector<1x128xf32>
    %cst_26 = arith.constant 1.000000e+00 : f32
    %54 = vector.broadcast %cst_26 : f32 to vector<1x128xf32>
    %55 = arith.addf %54, %53 : vector<1x128xf32>
    %56 = tpu.reciprocal %55 : vector<1x128xf32> -> vector<1x128xf32>
    %c0_27 = arith.constant 0 : index
    %c0_28 = arith.constant 0 : index
    %c0_29 = arith.constant 0 : index
    %c0_30 = arith.constant 0 : index
    %57 = vector.load %arg5[%c0_27, %c0_28, %c0_29, %c0_30] : memref<1x1x16x128xf32, #tpu.memory_space<vmem>>, vector<1x1x1x128xf32>
    %58 = vector.shape_cast %57 : vector<1x1x1x128xf32> to vector<1x128xf32>
    %59 = vector.shape_cast %56 : vector<1x128xf32> to vector<1x1x1x128xf32>
    tpu.vector_store %arg5[%c0_27, %c0_28, %c0_29, %c0_30], %59 {strides = array<i32>} : memref<1x1x16x128xf32, #tpu.memory_space<vmem>>, vector<1x1x1x128xf32>,
    %60 = vector.extract_strided_slice %1 {offsets = [14, 0], sizes = [1, 128], strides = [1, 1]} : vector<16x128xf32> to vector<1x128xf32>
    %61 = arith.subf %41, %60 : vector<1x128xf32>
    %62 = vector.extract_strided_slice %16 {offsets = [15, 0], sizes = [1, 128], strides = [1, 1]} : vector<16x128xf32> to vector<1x128xf32>
    %63 = arith.mulf %61, %61 : vector<1x128xf32>
    %64 = arith.mulf %62, %62 : vector<1x128xf32>
    %65 = arith.addf %63, %64 : vector<1x128xf32>
    %cst_31 = arith.constant 9.99999997E-7 : f32
    %66 = vector.broadcast %cst_31 : f32 to vector<1x128xf32>
    %67 = arith.addf %65, %66 : vector<1x128xf32>
    %68 = math.sqrt %67 : vector<1x128xf32>
    %cst_32 = arith.constant 0.000000e+00 : f32
    %69 = vector.broadcast %cst_32 : f32 to vector<1x128xf32>
    %70 = arith.subf %69, %68 : vector<1x128xf32>
    %71 = math.exp %70 : vector<1x128xf32>
    %cst_33 = arith.constant 1.000000e+00 : f32
    %72 = vector.broadcast %cst_33 : f32 to vector<1x128xf32>
    %73 = arith.addf %72, %71 : vector<1x128xf32>
    %74 = tpu.reciprocal %73 : vector<1x128xf32> -> vector<1x128xf32>
    %c0_34 = arith.constant 0 : index
    %c0_35 = arith.constant 0 : index
    %c15 = arith.constant 15 : index
    %c0_36 = arith.constant 0 : index
    %75 = vector.load %arg5[%c0_34, %c0_35, %c15, %c0_36] : memref<1x1x16x128xf32, #tpu.memory_space<vmem>>, vector<1x1x1x128xf32>
    %76 = vector.shape_cast %75 : vector<1x1x1x128xf32> to vector<1x128xf32>
    %77 = vector.shape_cast %74 : vector<1x128xf32> to vector<1x1x1x128xf32>
    tpu.vector_store %arg5[%c0_34, %c0_35, %c15, %c0_36], %77 {strides = array<i32>} : memref<1x1x16x128xf32, #tpu.memory_space<vmem>>, vector<1x1x1x128xf32>,
    return
  }
  func.func @transform_0(%arg0: i32, %arg1: i32) -> (i32, i32, i32, i32) {
    %c0_i32 = arith.constant 0 : i32
    %c0_i32_0 = arith.constant 0 : i32
    %c0_i32_1 = arith.constant 0 : i32
    return %arg0, %c0_i32, %arg1, %c0_i32_0 : i32, i32, i32, i32
  }
  func.func @transform_1(%arg0: i32, %arg1: i32) -> (i32, i32, i32, i32) {
    %c2_i32 = arith.constant 2 : i32
    %0 = arith.muli %arg1, %c2_i32 : i32
    %c1_i32 = arith.constant 1 : i32
    %1 = arith.subi %0, %c1_i32 : i32
    %c0_i32 = arith.constant 0 : i32
    %2 = arith.maxsi %1, %c0_i32 : i32
    %c0_i32_0 = arith.constant 0 : i32
    %c0_i32_1 = arith.constant 0 : i32
    %c0_i32_2 = arith.constant 0 : i32
    return %arg0, %c0_i32_0, %2, %c0_i32_1 : i32, i32, i32, i32
  }
  func.func @transform_2(%arg0: i32, %arg1: i32) -> (i32, i32, i32, i32) {
    %c1_i32 = arith.constant 1 : i32
    %0 = arith.addi %arg1, %c1_i32 : i32
    %c2_i32 = arith.constant 2 : i32
    %1 = arith.muli %0, %c2_i32 : i32
    %c1_i32_0 = arith.constant 1 : i32
    %2 = arith.minsi %1, %c1_i32_0 : i32
    %c0_i32 = arith.constant 0 : i32
    %c0_i32_1 = arith.constant 0 : i32
    %c0_i32_2 = arith.constant 0 : i32
    return %arg0, %c0_i32, %2, %c0_i32_1 : i32, i32, i32, i32
  }
  func.func @transform_3(%arg0: i32, %arg1: i32) -> (i32, i32, i32, i32) {
    %c0_i32 = arith.constant 0 : i32
    %c0_i32_0 = arith.constant 0 : i32
    %c0_i32_1 = arith.constant 0 : i32
    return %arg0, %c0_i32, %arg1, %c0_i32_0 : i32, i32, i32, i32
  }
}

</mosaic_0001>

<llo_original>
// kernel: tpu_custom_call.1
$region0: #{tpu_custom_call.1}
  #allocation0 [shape = 'u32[]', space=smem, size = 0x4, offset = 0x4, fixed_abs, tag = 'smem constant byte address 0x4 - core index']
  #allocation1 [shape = 'u32[144,128]{1,0:T(1,128)}', space=vmem, size = 0x12000, scoped, tag = 'internal scratch']
  %s0 = inlined_call_operand.hbm [shape: f32[2,4,16,128], index: 0, kind: input, shape index: {}]
  %s1 = inlined_call_operand.hbm [shape: f32[2,4,16,128], index: 1, kind: input, shape index: {}]
  %s2 = inlined_call_operand.hbm [shape: f32[2,4,16,128], index: 2, kind: input, shape index: {}]
  %s3 = inlined_call_operand.hbm [shape: f32[2,1,16,128], index: 3, kind: output, shape index: {}]
  %s4 = sld [smem:[#allocation0]]
  $region57: #{tpu_custom_call.1} parent=0
    _
  %s6 = ssub.s32 1, %s4
  %s7 = scalar_select 0, %s6, %s4
  $region1: #{tpu_custom_call.1} parent=0
    #allocation2 [shape = 'u8[16384]{0}', space=vmem, size = 0x4000, scoped, tag = 'input window, operand 0']
    #allocation3 [shape = 's32[2]{0}', space=sflag, size = 0x8, scoped, tag = 'scoped memory for tpu_custom_call.1']
    #allocation4 [shape = 's32[2]{0}', space=sflag, size = 0x8, scoped, tag = 'scoped memory for tpu_custom_call.1']
    #allocation5 [shape = 'u8[8192]{0}', space=vmem, size = 0x2000, scoped, tag = 'input window, operand 1']
    #allocation6 [shape = 's32[2]{0}', space=sflag, size = 0x8, scoped, tag = 'scoped memory for tpu_custom_call.1']
    #allocation7 [shape = 'u8[8192]{0}', space=vmem, size = 0x2000, scoped, tag = 'input window, operand 2']
    #allocation8 [shape = 'u8[16384]{0}', space=vmem, size = 0x4000, scoped, tag = 'output window, operand 0']
    %8 = vsyncpa [#allocation3], 0
    %s9 = scalar_lea.sflag [#allocation3], 1
    %10 = vsyncpa %s9, 0
    %11 = vsyncpa [#allocation6], 0
    %s12 = scalar_lea.sflag [#allocation6], 1
    %13 = vsyncpa %s12, 0
    %14 = vsyncpa [#allocation4], 0
    %s15 = scalar_lea.sflag [#allocation4], 1
    %16 = vsyncpa %s15, 0
    loop: start=0, step=1, limit=4
    $region2: #{tpu_custom_call.1} parent=1 // loop_pre_header
      _
    $region3: #{tpu_custom_call.1} parent=1 // loop_header
      %s18 = sphi 0, %s22
      %p19 = scmp.ge.s32.totalorder %s18, 4
      %s25 = sphi 0, %s37
      %s26 = sphi 0, %s33
      %s27 = sphi 0, %s25
      %s28 = sphi 0, %s26
      %s29 = sphi 0, %s27
      %s30 = sphi 0, %s28
      %s42 = sphi 0, %s44
      %s45 = sphi 0, %s42
      %s46 = sphi 0, %s45
      %s62 = sphi 0, %s46
      %s78 = sphi 0, %s80
      %s81 = sphi 0, %s78
      %s82 = sphi 0, %s81
      %s98 = sphi 0, %s82
      %s114 = sphi 0, %s116
      %s117 = sphi 0, %s114
      %s118 = sphi 0, %s117
      %s134 = sphi 0, %s118
      %s142 = sphi 0, %s144
      %s145 = sphi 0, %s142
      %s146 = sphi 0, %s145
      %s162 = sphi 0, %s146
    $region4: #{tpu_custom_call.1} parent=1 // loop_header_branch
      %21 = sbr.rel (%p19) target = $region8
    $region5: #{tpu_custom_call.1} parent=1 // loop_body
      %s23 = ssub.s32 %s18, 1
      %s24 = ssub.s32 %s18, 2
      %s31 = sadd.s32 1, %s26
      %p32 = scmp.ge.s32.totalorder %s31, 1
      %s33 = scalar_select %p32, 0, %s31
      %s34 = sadd.s32 1, %s25
      %s35 = scalar_select %p32, %s34, %s25
      %p36 = scmp.ge.s32.totalorder %s35, 2
      %s37 = scalar_select %p36, 0, %s35
      %s38 = ssub.s32 %s25, %s37
      %s39 = ssub.s32 %s26, %s33
      %s40 = sor.u32 %s38, %s39
      %p41 = scmp.eq.s32.totalorder %s40, 0
      %s43 = sadd.s32 %s42, 1
      %s44 = scalar_select %p41, %s42, %s43
      %p47 = pneg %p41
      %p48 = scmp.eq.s32.totalorder %s18, 1
      %p49 = por %p47, %p48
      %p50 = scmp.ne.s32.totalorder %s42, %s45
      %p51 = scmp.eq.s32.totalorder %s18, 0
      %p52 = por %p50, %p51
      %p53 = scmp.ne.s32.totalorder %s42, %s45
      %p54 = scmp.eq.s32.totalorder %s23, 1
      %p55 = por %p53, %p54
      %p56 = scmp.ne.s32.totalorder %s45, %s46
      %p57 = scmp.eq.s32.totalorder %s23, 0
      %p58 = por %p56, %p57
      %p59 = scmp.ne.s32.totalorder %s45, %s46
      %p60 = scmp.eq.s32.totalorder %s24, 1
      %p61 = por %p59, %p60
      %p63 = scmp.ne.s32.totalorder %s46, %s62
      %p64 = scmp.eq.s32.totalorder %s24, 0
      %p65 = por %p63, %p64
      %s66 = smul.u32 %s26, 2
      %s67 = ssub.s32 %s66, 1
      %p68 = scmp.gt.s32.totalorder %s67, 0
      %s69 = scalar_select %p68, %s67, 0
      %s70 = smul.u32 %s33, 2
      %s71 = ssub.s32 %s70, 1
      %p72 = scmp.gt.s32.totalorder %s71, 0
      %s73 = scalar_select %p72, %s71, 0
      %s74 = ssub.s32 %s25, %s37
      %s75 = ssub.s32 %s69, %s73
      %s76 = sor.u32 %s74, %s75
      %p77 = scmp.eq.s32.totalorder %s76, 0
      %s79 = sadd.s32 %s78, 1
      %s80 = scalar_select %p77, %s78, %s79
      %p83 = pneg %p77
      %p84 = scmp.eq.s32.totalorder %s18, 1
      %p85 = por %p83, %p84
      %p86 = scmp.ne.s32.totalorder %s78, %s81
      %p87 = scmp.eq.s32.totalorder %s18, 0
      %p88 = por %p86, %p87
      %p89 = scmp.ne.s32.totalorder %s78, %s81
      %p90 = scmp.eq.s32.totalorder %s23, 1
      %p91 = por %p89, %p90
      %p92 = scmp.ne.s32.totalorder %s81, %s82
      %p93 = scmp.eq.s32.totalorder %s23, 0
      %p94 = por %p92, %p93
      %p95 = scmp.ne.s32.totalorder %s81, %s82
      %p96 = scmp.eq.s32.totalorder %s24, 1
      %p97 = por %p95, %p96
      %p99 = scmp.ne.s32.totalorder %s82, %s98
      %p100 = scmp.eq.s32.totalorder %s24, 0
      %p101 = por %p99, %p100
      %s102 = sadd.s32 %s26, 1
      %s103 = smul.u32 %s102, 2
      %p104 = scmp.lt.s32.totalorder %s103, 1
      %s105 = scalar_select %p104, %s103, 1
      %s106 = sadd.s32 %s33, 1
      %s107 = smul.u32 %s106, 2
      %p108 = scmp.lt.s32.totalorder %s107, 1
      %s109 = scalar_select %p108, %s107, 1
      %s110 = ssub.s32 %s25, %s37
      %s111 = ssub.s32 %s105, %s109
      %s112 = sor.u32 %s110, %s111
      %p113 = scmp.eq.s32.totalorder %s112, 0
      %s115 = sadd.s32 %s114, 1
      %s116 = scalar_select %p113, %s114, %s115
      %p119 = pneg %p113
      %p120 = scmp.eq.s32.totalorder %s18, 1
      %p121 = por %p119, %p120
      %p122 = scmp.ne.s32.totalorder %s114, %s117
      %p123 = scmp.eq.s32.totalorder %s18, 0
      %p124 = por %p122, %p123
      %p125 = scmp.ne.s32.totalorder %s114, %s117
      %p126 = scmp.eq.s32.totalorder %s23, 1
      %p127 = por %p125, %p126
      %p128 = scmp.ne.s32.totalorder %s117, %s118
      %p129 = scmp.eq.s32.totalorder %s23, 0
      %p130 = por %p128, %p129
      %p131 = scmp.ne.s32.totalorder %s117, %s118
      %p132 = scmp.eq.s32.totalorder %s24, 1
      %p133 = por %p131, %p132
      %p135 = scmp.ne.s32.totalorder %s118, %s134
      %p136 = scmp.eq.s32.totalorder %s24, 0
      %p137 = por %p135, %p136
      %s138 = ssub.s32 %s25, %s37
      %s139 = ssub.s32 %s26, %s33
      %s140 = sor.u32 %s138, %s139
      %p141 = scmp.eq.s32.totalorder %s140, 0
      %s143 = sadd.s32 %s142, 1
      %s144 = scalar_select %p141, %s142, %s143
      %p147 = pneg %p141
      %p148 = scmp.eq.s32.totalorder %s18, 1
      %p149 = por %p147, %p148
      %p150 = scmp.ne.s32.totalorder %s142, %s145
      %p151 = scmp.eq.s32.totalorder %s18, 0
      %p152 = por %p150, %p151
      %p153 = scmp.ne.s32.totalorder %s142, %s145
      %p154 = scmp.eq.s32.totalorder %s23, 1
      %p155 = por %p153, %p154
      %p156 = scmp.ne.s32.totalorder %s145, %s146
      %p157 = scmp.eq.s32.totalorder %s23, 0
      %p158 = por %p156, %p157
      %p159 = scmp.ne.s32.totalorder %s145, %s146
      %p160 = scmp.eq.s32.totalorder %s24, 1
      %p161 = por %p159, %p160
      %p163 = scmp.ne.s32.totalorder %s146, %s162
      %p164 = scmp.eq.s32.totalorder %s24, 0
      %p165 = por %p163, %p164
      %p166 = scmp.le.s32.totalorder 1, %s18
      %p167 = scmp.lt.s32.totalorder %s18, 3
      %p168 = pnand %p166, %p167
      %p169 = pneg %p168
      // Predicated region
      $region9: #{tpu_custom_call.1} parent=5 // pred_check
        _
      $region10: #{tpu_custom_call.1} parent=5 // pred_check_branch
        %171 = sbr.rel (%p168) target = $region12
      $region11: #{tpu_custom_call.1} parent=5 // pred_region
        %s172 = ssub.s32 %s18, 1
      $region12: #{tpu_custom_call.1} parent=5 // pred_fallthru
        _
      %p173 = scmp.lt.s32.totalorder %s18, 2
      // Predicated region
      $region13: #{tpu_custom_call.1} parent=5 // pred_check
        %p174 = pneg %p173
      $region14: #{tpu_custom_call.1} parent=5 // pred_check_branch
        %176 = sbr.rel (%p174) target = $region16
      $region15: #{tpu_custom_call.1} parent=5 // pred_region
        // Predicated region
        $region17: #{tpu_custom_call.1} parent=15 // pred_check
          %p177 = pneg %p52
        $region18: #{tpu_custom_call.1} parent=15 // pred_check_branch
          %179 = sbr.rel (%p177) target = $region20
        $region19: #{tpu_custom_call.1} parent=15 // pred_region
          %s180 = sand.u32 %s42, 1
          %s181 = scalar_lea.sflag [#allocation3], %s180
          %s182 = sand.u32 %s42, 1
          %s183 = smul.addr %s182, 16
          %s184 = scalar_lea.vmem [#allocation2], %s183
          %s185 = smul.u32 2, %s26
          %s187 = ssub.s32 256, 256
          %188 = vsyncadd %s181, %s187
          %s189 = smul.addr %s25, 8
          %s190 = sadd.s32 %s185, %s189
          %s191 = smul.addr %s190, 128
          %s192 = scalar_lea.hbm %s0, %s191
          %s193 = sshll.u32 %s184, 4
          %s194 = int_to_ptr.vmem [resolvable:$true] %s193
          %199 = dma.hbm_to_vmem [thread:$0]  %s192, 256, %s194, %s181, 128, 128, 8
        $region20: #{tpu_custom_call.1} parent=15 // pred_fallthru
          _
        // Predicated region
        $region21: #{tpu_custom_call.1} parent=15 // pred_check
          %p200 = pneg %p88
        $region22: #{tpu_custom_call.1} parent=15 // pred_check_branch
          %202 = sbr.rel (%p200) target = $region24
        $region23: #{tpu_custom_call.1} parent=15 // pred_region
          %s203 = sand.u32 %s18, 1
          %s204 = scalar_lea.sflag [#allocation6], %s203
          %s205 = sand.u32 %s78, 1
          %s206 = smul.addr %s205, 8
          %s207 = scalar_lea.vmem [#allocation5], %s206
          %s208 = smul.u32 %s26, 2
          %s209 = ssub.s32 %s208, 1
          %p210 = scmp.gt.s32.totalorder %s209, 0
          %s211 = scalar_select %p210, %s209, 0
          %s213 = ssub.s32 128, 128
          %214 = vsyncadd %s204, %s213
          %s215 = smul.addr %s25, 8
          %s216 = sadd.s32 %s211, %s215
          %s217 = smul.addr %s216, 128
          %s218 = scalar_lea.hbm %s1, %s217
          %s220 = sshll.u32 %s207, 4
          %s221 = int_to_ptr.vmem [resolvable:$true] %s220
          %223 = dma.hbm_to_vmem [thread:$0]  %s218, 128, %s221, %s204
        $region24: #{tpu_custom_call.1} parent=15 // pred_fallthru
          _
        // Predicated region
        $region25: #{tpu_custom_call.1} parent=15 // pred_check
          %p224 = pneg %p124
        $region26: #{tpu_custom_call.1} parent=15 // pred_check_branch
          %226 = sbr.rel (%p224) target = $region28
        $region27: #{tpu_custom_call.1} parent=15 // pred_region
          %s227 = sand.u32 %s18, 1
          %s228 = scalar_lea.sflag [#allocation6], %s227
          %s229 = sand.u32 %s114, 1
          %s230 = smul.addr %s229, 8
          %s231 = scalar_lea.vmem [#allocation7], %s230
          %s232 = sadd.s32 %s26, 1
          %s233 = smul.u32 %s232, 2
          %p234 = scmp.lt.s32.totalorder %s233, 1
          %s235 = scalar_select %p234, %s233, 1
          %s237 = ssub.s32 128, 128
          %238 = vsyncadd %s228, %s237
          %s239 = smul.addr %s25, 8
          %s240 = sadd.s32 %s235, %s239
          %s241 = smul.addr %s240, 128
          %s242 = scalar_lea.hbm %s2, %s241
          %s244 = sshll.u32 %s231, 4
          %s245 = int_to_ptr.vmem [resolvable:$true] %s244
          %247 = dma.hbm_to_vmem [thread:$0]  %s242, 128, %s245, %s228
        $region28: #{tpu_custom_call.1} parent=15 // pred_fallthru
          _
      $region16: #{tpu_custom_call.1} parent=5 // pred_fallthru
        _
      %p248 = scmp.le.s32.totalorder 1, %s18
      %p249 = scmp.lt.s32.totalorder %s18, 3
      %p250 = pnand %p248, %p249
      %p251 = pneg %p250
      // Predicated region
      $region29: #{tpu_custom_call.1} parent=5 // pred_check
        _
      $region30: #{tpu_custom_call.1} parent=5 // pred_check_branch
        %253 = sbr.rel (%p250) target = $region32
      $region31: #{tpu_custom_call.1} parent=5 // pred_region
        %s254 = ssub.s32 %s18, 1
        %s255 = sand.u32 %s45, 1
        %s256 = scalar_lea.sflag [#allocation3], %s255
        %s257 = sand.u32 %s45, 1
        %s258 = smul.addr %s257, 16
        %s259 = scalar_lea.vmem [#allocation2], %s258
        // Predicated region
        $region33: #{tpu_custom_call.1} parent=31 // pred_check
          %p260 = pneg %p58
        $region34: #{tpu_custom_call.1} parent=31 // pred_check_branch
          %262 = sbr.rel (%p260) target = $region36
        $region35: #{tpu_custom_call.1} parent=31 // pred_region
          %263 = dma.done %s256, 256
        $region36: #{tpu_custom_call.1} parent=31 // pred_fallthru
          _
        %s264 = sand.u32 %s23, 1
        %s265 = scalar_lea.sflag [#allocation6], %s264
        %s266 = sand.u32 %s81, 1
        %s267 = smul.addr %s266, 8
        %s268 = scalar_lea.vmem [#allocation5], %s267
        // Predicated region
        $region37: #{tpu_custom_call.1} parent=31 // pred_check
          %p269 = pneg %p94
        $region38: #{tpu_custom_call.1} parent=31 // pred_check_branch
          %271 = sbr.rel (%p269) target = $region40
        $region39: #{tpu_custom_call.1} parent=31 // pred_region
          %272 = dma.done %s265, 128
        $region40: #{tpu_custom_call.1} parent=31 // pred_fallthru
          _
        %s273 = sand.u32 %s23, 1
        %s274 = scalar_lea.sflag [#allocation6], %s273
        %s275 = sand.u32 %s117, 1
        %s276 = smul.addr %s275, 8
        %s277 = scalar_lea.vmem [#allocation7], %s276
        // Predicated region
        $region41: #{tpu_custom_call.1} parent=31 // pred_check
          %p278 = pneg %p130
        $region42: #{tpu_custom_call.1} parent=31 // pred_check_branch
          %280 = sbr.rel (%p278) target = $region44
        $region43: #{tpu_custom_call.1} parent=31 // pred_region
          %281 = dma.done %s274, 128
        $region44: #{tpu_custom_call.1} parent=31 // pred_fallthru
          _
        %s282 = sand.u32 %s45, 1
        %s283 = scalar_lea.sflag [#allocation3], %s282
        %s284 = sand.u32 %s45, 1
        %s285 = smul.addr %s284, 16
        %s286 = scalar_lea.vmem [#allocation2], %s285
        %p287 = pneg %p58
        %p288 = pneg %p55
        %s289 = sand.u32 %s23, 1
        %s290 = scalar_lea.sflag [#allocation6], %s289
        %s291 = sand.u32 %s81, 1
        %s292 = smul.addr %s291, 8
        %s293 = scalar_lea.vmem [#allocation5], %s292
        %p294 = pneg %p94
        %p295 = pneg %p91
        %s296 = sand.u32 %s23, 1
        %s297 = scalar_lea.sflag [#allocation6], %s296
        %s298 = sand.u32 %s117, 1
        %s299 = smul.addr %s298, 8
        %s300 = scalar_lea.vmem [#allocation7], %s299
        %p301 = pneg %p130
        %p302 = pneg %p127
        %p303 = pneg %p158
        %p304 = pneg %p155
        %s305 = sand.u32 %s145, 1
        %s306 = scalar_lea.sflag [#allocation4], %s305
        %s307 = sand.u32 %s145, 1
        %s308 = smul.addr %s307, 16
        %s309 = scalar_lea.vmem [#allocation8], %s308
        %s310 = smul.u32 2, %s28
        %s311 = smul.u32 %s28, 2
        %s312 = ssub.s32 %s311, 1
        %p313 = scmp.gt.s32.totalorder %s312, 0
        %s314 = scalar_select %p313, %s312, 0
        %s315 = sadd.s32 %s28, 1
        %s316 = smul.u32 %s315, 2
        %p317 = scmp.lt.s32.totalorder %s316, 1
        %s318 = scalar_select %p317, %s316, 1
        %s319 = smul.u32 2, %s28
        %v320 = vld [vmem:[%s259] sm:$0xff]
        %v321 = vld [vmem:[%s259 + $0x8] sm:$0xff]
        %v322 = vrot.slane %v320, 1
        %v323 = vrot.slane %v321, 1
        %v324 = vlaneseq
        %v325 = vshrl.u32 %v324, 7
        %vm326 = vcmp.lt.s32.totalorder %v325, 7
        %v327 = vsel %vm326, %v322, %v323
        %v328 = vsel %vm326, %v323, %v322
        %v329 = vrot.slane %v320, 7
        %v330 = vrot.slane %v321, 7
        %vm331 = vcmp.lt.s32.totalorder %v325, 1
        %v332 = vsel %vm331, %v329, %v330
        %v333 = vsel %vm331, %v330, %v329
        %v334 = vsub.f32 %v327, %v333
        %v335 = vsub.f32 %v328, %v332
        %v336 = vlaneseq
        %v337 = vand.u32 %v336, 127
        %vm338 = vcmp.eq.s32.totalorder %v337, 127
        %339 = vrot.lane.b32.xlu0 %v320, 127
        %v340 = vpop.permute.xlu0 %339
        %341 = vrot.lane.b32.xlu0 %v321, 127
        %v342 = vpop.permute.xlu0 %341
        %v343 = vsel %vm338, 0.0, %v340
        %v344 = vsel %vm338, 0.0, %v342
        %vm345 = vcmp.eq.s32.totalorder %v337, 0
        %346 = vrot.lane.b32.xlu0 %v320, 1
        %v347 = vpop.permute.xlu0 %346
        %348 = vrot.lane.b32.xlu0 %v321, 1
        %v349 = vpop.permute.xlu0 %348
        %v350 = vsel %vm345, 0.0, %v347
        %v351 = vsel %vm345, 0.0, %v349
        %v352 = vsub.f32 %v343, %v350
        %v353 = vsub.f32 %v344, %v351
        %v354 = vmul.f32 %v334, %v334
        %v355 = vmul.f32 %v335, %v335
        %v356 = vmul.f32 %v352, %v352
        %v357 = vmul.f32 %v353, %v353
        %v358 = vadd.f32 %v354, %v356
        %v359 = vadd.f32 %v355, %v357
        %v360 = vadd.f32 %v358, 1e-06
        %v361 = vadd.f32 %v359, 1e-06
        %v362 = vrsqrt.pop %v360
        %v363 = vmul.f32 %v360, %v362
        %vm364 = vcmp.eq.f32.partialorder %v360, inf
        %v365 = vsel %vm364, %v360, %v363
        %vm366 = vcmp.eq.f32.partialorder %v360, 0.0
        %v367 = vand.u32 %v360, 2147483648
        %v368 = vsel %vm366, %v367, %v365
        %v369 = vrsqrt.pop %v361
        %v370 = vmul.f32 %v361, %v369
        %vm371 = vcmp.eq.f32.partialorder %v361, inf
        %v372 = vsel %vm371, %v361, %v370
        %vm373 = vcmp.eq.f32.partialorder %v361, 0.0
        %v374 = vand.u32 %v361, 2147483648
        %v375 = vsel %vm373, %v374, %v372
        %v376 = vsub.f32 0.0, %v368
        %v377 = vsub.f32 0.0, %v375
        %v378 = vmul.f32 %v376, 1.442695
        %v379 = vpow.pop %v378
        %v380 = vmul.f32 %v377, 1.442695
        %v381 = vpow.pop %v380
        %v382 = vadd.f32 %v379, 1.0
        %v383 = vadd.f32 %v381, 1.0
        %v384 = vrcp.pop %v382
        %v385 = vrcp.pop %v383
        %386 = vst [vmem:[%s309] sm:$0xff] %v384
        %387 = vst [vmem:[%s309 + $0x8] sm:$0xff] %v385
        %v388 = vld [vmem:[%s268 + $0x7] sm:$0x1]
        %p389 = scmp.gt.s32.totalorder %s28, 0
        %s390 = scalar_select %p389, 1, 0
        %v391 = vstv %s390
        %vm392 = vcmp.eq.s32.totalorder %v391, 1
        %v393 = vsel %vm392, %v388, 0.0
        %v394 = vld [vmem:[%s277] sm:$0x1]
        %p395 = scmp.lt.s32.totalorder %s28, 0
        %s396 = scalar_select %p395, 1, 0
        %v397 = vstv %s396
        %vm398 = vcmp.eq.s32.totalorder %v397, 1
        %v399 = vsel %vm398, %v394, 0.0
        %v401 = vrot.slane %v393, 7
        %v403 = vsub.f32 %v320, %v401
        %v404 = vmul.f32 %v403, %v403
        %v406 = vrot.slane %v356, 7
        %v408 = vadd.f32 %v404, %v406
        %v409 = vadd.f32 %v408, 1e-06
        %v410 = vrsqrt.pop %v409
        %v411 = vmul.f32 %v409, %v410
        %vm412 = vcmp.eq.f32.partialorder %v409, inf
        %v413 = vsel %vm412, %v409, %v411
        %vm414 = vcmp.eq.f32.partialorder %v409, 0.0
        %v415 = vand.u32 %v409, 2147483648
        %v416 = vsel %vm414, %v415, %v413
        %v417 = vsub.f32 0.0, %v416
        %v418 = vmul.f32 %v417, 1.442695
        %v419 = vpow.pop %v418
        %v420 = vadd.f32 %v419, 1.0
        %v421 = vrcp.pop %v420
        %422 = vst [vmem:[%s309 - $0x1] sm:$0x2] %v421
        %v424 = vrot.slane %v321, 6
        %v426 = vsub.f32 %v399, %v424
        %v427 = vmul.f32 %v426, %v426
        %v429 = vrot.slane %v357, 7
        %v431 = vadd.f32 %v427, %v429
        %v432 = vadd.f32 %v431, 1e-06
        %v433 = vrsqrt.pop %v432
        %v434 = vmul.f32 %v432, %v433
        %vm435 = vcmp.eq.f32.partialorder %v432, inf
        %v436 = vsel %vm435, %v432, %v434
        %vm437 = vcmp.eq.f32.partialorder %v432, 0.0
        %v438 = vand.u32 %v432, 2147483648
        %v439 = vsel %vm437, %v438, %v436
        %v440 = vsub.f32 0.0, %v439
        %v441 = vmul.f32 %v440, 1.442695
        %v442 = vpow.pop %v441
        %v443 = vadd.f32 %v442, 1.0
        %v444 = vrcp.pop %v443
        %445 = vst [vmem:[%s309 + $0xf] sm:$0x1] %v444
        %s446 = sand.u32 %s145, 1
        %s447 = scalar_lea.sflag [#allocation4], %s446
        %s448 = sand.u32 %s145, 1
        %s449 = smul.addr %s448, 16
        %s450 = scalar_lea.vmem [#allocation8], %s449
        // Predicated region
        $region45: #{tpu_custom_call.1} parent=31 // pred_check
          %p451 = pneg %p155
        $region46: #{tpu_custom_call.1} parent=31 // pred_check_branch
          %453 = sbr.rel (%p451) target = $region48
        $region47: #{tpu_custom_call.1} parent=31 // pred_region
          %s454 = smul.u32 2, %s28
          %s456 = ssub.s32 256, 256
          %457 = vsyncadd %s447, %s456
          %s458 = smul.addr %s27, 2
          %s459 = sadd.s32 %s454, %s458
          %s460 = smul.addr %s459, 128
          %s461 = scalar_lea.hbm %s3, %s460
          %s462 = sshll.u32 %s450, 4
          %s463 = int_to_ptr.vmem [resolvable:$true] %s462
          %468 = dma.vmem_to_hbm [thread:$0]  %s463, 256, %s461, %s447, 128, 128, 8
        $region48: #{tpu_custom_call.1} parent=31 // pred_fallthru
          _
      $region32: #{tpu_custom_call.1} parent=5 // pred_fallthru
        _
      %p469 = scmp.le.s32.totalorder 2, %s18
      // Predicated region
      $region49: #{tpu_custom_call.1} parent=5 // pred_check
        %p470 = pneg %p469
      $region50: #{tpu_custom_call.1} parent=5 // pred_check_branch
        %472 = sbr.rel (%p470) target = $region52
      $region51: #{tpu_custom_call.1} parent=5 // pred_region
        %s473 = ssub.s32 %s18, 2
        // Predicated region
        $region53: #{tpu_custom_call.1} parent=51 // pred_check
          %p474 = pneg %p161
        $region54: #{tpu_custom_call.1} parent=51 // pred_check_branch
          %476 = sbr.rel (%p474) target = $region56
        $region55: #{tpu_custom_call.1} parent=51 // pred_region
          %s477 = sand.u32 %s146, 1
          %s478 = scalar_lea.sflag [#allocation4], %s477
          %s479 = sand.u32 %s146, 1
          %s480 = smul.addr %s479, 16
          %s481 = scalar_lea.vmem [#allocation8], %s480
          %482 = dma.done %s478, 256
        $region56: #{tpu_custom_call.1} parent=51 // pred_fallthru
          _
      $region52: #{tpu_custom_call.1} parent=5 // pred_fallthru
        _
    $region6: #{tpu_custom_call.1} parent=1 // loop_footer
      %s22 = sadd.s32 1, %s18
    $region7: #{tpu_custom_call.1} parent=1 // loop_footer_branch
      %17 = sbr.rel target = $region3
    $region8: #{tpu_custom_call.1} parent=1 // loop_exit
      _
    %483 = vsyncpa [#allocation3], 1
    %s484 = scalar_lea.sflag [#allocation3], 1
    %485 = vsyncpa %s484, 1
    %486 = vsyncpa [#allocation6], 1
    %s487 = scalar_lea.sflag [#allocation6], 1
    %488 = vsyncpa %s487, 1
    %489 = vsyncpa [#allocation4], 1
    %s490 = scalar_lea.sflag [#allocation4], 1
    %491 = vsyncpa %s490, 1

</llo_original>
